<compile_context>
chip_gen: v7x
topology: tpu7x:2x2x1
jax: 0.10.0
libtpu: 0.0.40
codegen_flags: <defaults>
</compile_context>

<pallas_src>
import numpy as np
import jax
import jax.numpy as jnp
from jax.experimental import pallas as pl
from jax.experimental.pallas import tpu as pltpu


def _adaptive_pool_matrix(H, W):
    """(H*W, 16) matrix P such that x_flat @ P == adaptive_avg_pool2d(x, (4,4))
    spatially flattened (PyTorch bin rule: start=floor(i*n/4), end=ceil((i+1)*n/4))."""
    P = np.zeros((H * W, 16), np.float32)
    for p in range(4):
        hs, he = (p * H) // 4, -((-(p + 1) * H) // 4)
        for q in range(4):
            ws, we = (q * W) // 4, -((-(q + 1) * W) // 4)
            inv_area = 1.0 / ((he - hs) * (we - ws))
            for hh in range(hs, he):
                for ww in range(ws, we):
                    P[hh * W + ww, p * 4 + q] = inv_area
    return P


def _pool_conv_kernel(x_ref, pt_ref, wc_ref, shift_ref, o_ref):
    # x_ref:     (B, C, H*W) f32   block of B batch samples
    # pt_ref:    (H*W, 16)   f32   adaptive-avg-pool matrix          (fetched once)
    # wc_ref:    (128, C)    f32   1x1 conv weight, BN scale folded  (fetched once)
    # shift_ref: (1, 128)    f32   folded BN shift per out channel   (fetched once)
    # o_ref:     (B, 2048)   bf16  lane-dense activations, flat index = s*128 + o
    pooled = jnp.einsum("bcx,xs->bcs", x_ref[...], pt_ref[...],
                        preferred_element_type=jnp.float32)          # (B, C, 16)
    conv = jnp.einsum("bcs,oc->bso", pooled, wc_ref[...],
                      preferred_element_type=jnp.float32)            # (B, 16, 128)
    y = jnp.maximum(conv + shift_ref[...], 0.0)                      # BN shift + ReLU
    # Lane-dense store: flatten (16, 128) -> 2048 lanes per sample.
    o_ref[...] = y.astype(o_ref.dtype).reshape(o_ref.shape)


def _fc_kernel(f_ref, w1_ref, b1_ref, w2_ref, b2_ref, o_ref, acc_ref):
    # Grid axis tiles the 1024-wide hidden dim; bf16 weight tiles stream through
    # double-buffered VMEM while fc2 contributions accumulate in f32 scratch.
    h = pl.program_id(0)

    @pl.when(h == 0)
    def _init():
        acc_ref[...] = jnp.zeros_like(acc_ref)

    hid = jnp.dot(f_ref[...], w1_ref[...], preferred_element_type=jnp.float32)
    hid = jnp.maximum(hid + b1_ref[...], 0.0)                        # fc1 + ReLU
    # F.dropout(p=0.7, training=False) -> identity in eval mode.
    acc_ref[...] += jnp.dot(hid.astype(w2_ref.dtype), w2_ref[...],
                            preferred_element_type=jnp.float32)      # fc2 partial sum

    @pl.when(h == pl.num_programs(0) - 1)
    def _finalize():
        o_ref[...] = acc_ref[...] + b2_ref[...]


def inception_aux_forward(x, params, *, hidden_tile=256):
    """x: (N, Cin, H, W) float32.  Returns (N, output_dim) float32 (eval mode)."""
    N, C, H, W = x.shape
    S = 16                                    # 4*4 pooled spatial positions
    HW = H * W
    FEAT = 128 * S                            # 2048 flattened features
    Hd = params["fc1_w"].shape[0]             # 1024 hidden units
    D = params["fc2_w"].shape[0]              # output_dim

    # ---- one-time host-side preprocessing ---------------------------------
    pt = jnp.asarray(_adaptive_pool_matrix(H, W))                    # (HW, 16)

    # Fold BatchNorm2d(eps=0.001) eval-mode stats: scale -> conv weight, keep shift.
    eps = 1e-3
    scale = params["bn_gamma"] / jnp.sqrt(params["bn_var"] + eps)
    wc = (params["conv_w"] * scale[:, None]).astype(jnp.float32)     # (128, C)
    shift = (params["bn_beta"] - params["bn_mean"] * scale)
    shift = shift.reshape(1, 128).astype(jnp.float32)

    # Stage 1 emits flat index s*128 + o; permute fc1's input axis from torch's
    # o*16 + s order to match, and cast FC weights to bf16 (f32 accumulation).
    w1t = (params["fc1_w"].T                  # (2048, 1024), rows = o*16 + s
           .reshape(128, S, Hd)               # [o, s, m]
           .transpose(1, 0, 2)                # [s, o, m]
           .reshape(FEAT, Hd)                 # rows = s*128 + o
           .astype(jnp.bfloat16))
    b1 = params["fc1_b"].reshape(1, Hd).astype(jnp.float32)
    w2t = params["fc2_w"].T.astype(jnp.bfloat16)                     # (1024, D)
    b2 = params["fc2_b"].reshape(1, D).astype(jnp.float32)

    # ---- stage 1: adaptive avg-pool (4,4) + 1x1 conv + BN + ReLU ----------
    # B samples per grid step: amortizes per-step overhead and gives the MXU
    # B*16 output columns instead of 16.
    B = 8 if N % 8 == 0 else N
    x_flat = x.reshape(N, C, HW).astype(jnp.float32)

    conv_cost = pl.CostEstimate(
        flops=2 * N * C * HW * S + 2 * N * 128 * C * S,
        transcendentals=0,
        bytes_accessed=4 * (N * C * HW + HW * S + 128 * C + 128) + 2 * N * FEAT)

    flat = pl.pallas_call(
        _pool_conv_kernel,
        out_shape=jax.ShapeDtypeStruct((N, FEAT), jnp.bfloat16),
        grid_spec=pltpu.PrefetchScalarGridSpec(
            num_scalar_prefetch=0,
            grid=(N // B,),
            in_specs=[
                pl.BlockSpec((B, C, HW), lambda n: (n, 0, 0)),
                pl.BlockSpec((HW, S), lambda n: (0, 0)),
                pl.BlockSpec((128, C), lambda n: (0, 0)),
                pl.BlockSpec((1, 128), lambda n: (0, 0)),
            ],
            out_specs=pl.BlockSpec((B, FEAT), lambda n: (n, 0)),
        ),
        # Batch-block axis is independent -> shards across TCs on v7x megacore.
        compiler_params=pltpu.CompilerParams(dimension_semantics=("parallel",)),
        cost_estimate=conv_cost,
    )(x_flat, pt, wc, shift)

    # ---- stage 2: fc1 -> ReLU -> (dropout = identity) -> fc2 --------------
    tn = min(hidden_tile, Hd)
    assert Hd % tn == 0

    fc_cost = pl.CostEstimate(
        flops=2 * N * FEAT * Hd + 2 * N * Hd * D,
        transcendentals=0,
        bytes_accessed=2 * (FEAT * Hd + Hd * D + N * FEAT) + 4 * (Hd + D + N * D))

    out = pl.pallas_call(
        _fc_kernel,
        out_shape=jax.ShapeDtypeStruct((N, D), jnp.float32),
        grid_spec=pltpu.PrefetchScalarGridSpec(
            num_scalar_prefetch=0,
            grid=(Hd // tn,),
            in_specs=[
                pl.BlockSpec((N, FEAT), lambda h: (0, 0)),   # activations (resident)
                pl.BlockSpec((FEAT, tn), lambda h: (0, h)),  # fc1 weight tile (streamed)
                pl.BlockSpec((1, tn), lambda h: (0, h)),     # fc1 bias tile
                pl.BlockSpec((tn, D), lambda h: (h, 0)),     # fc2 weight tile (streamed)
                pl.BlockSpec((1, D), lambda h: (0, 0)),      # fc2 bias (resident)
            ],
            out_specs=pl.BlockSpec((N, D), lambda h: (0, 0)),
            scratch_shapes=[pltpu.VMEM((N, D), jnp.float32)],
        ),
        # Hidden-dim axis accumulates into the output -> must stay "arbitrary".
        compiler_params=pltpu.CompilerParams(dimension_semantics=("arbitrary",)),
        cost_estimate=fc_cost,
    )(flat, w1t, b1, w2t, b2)
    return out


def reference(x, params):
    """Pure-JAX reference mirroring the PyTorch forward (eval mode)."""
    N, C, H, W = x.shape
    rows = []
    for p in range(4):
        hs, he = (p * H) // 4, -((-(p + 1) * H) // 4)
        cols = []
        for q in range(4):
            ws, we = (q * W) // 4, -((-(q + 1) * W) // 4)
            cols.append(x[:, :, hs:he, ws:we].mean(axis=(2, 3)))
        rows.append(jnp.stack(cols, axis=-1))
    xp = jnp.stack(rows, axis=-2)                                    # (N, C, 4, 4)
    y = jnp.einsum("oc,ncpq->nopq", params["conv_w"], xp)            # 1x1 conv, no bias
    eps = 1e-3
    scale = params["bn_gamma"] / jnp.sqrt(params["bn_var"] + eps)
    shift = params["bn_beta"] - params["bn_mean"] * scale
    y = jnp.maximum(y * scale[None, :, None, None] + shift[None, :, None, None], 0.0)
    f = y.reshape(N, -1)                                             # torch.flatten(x, 1)
    h = jnp.maximum(f @ params["fc1_w"].T + params["fc1_b"], 0.0)
    return h @ params["fc2_w"].T + params["fc2_b"]


if __name__ == "__main__":
    key = jax.random.PRNGKey(0)
    ks = jax.random.split(key, 10)
    Cin, D = 4, 16
    N, H, W = 2, 16, 16

    params = {
        # nn.Conv2d(Cin, 128, kernel_size=1, bias=False): weight (128, Cin, 1, 1) squeezed
        "conv_w": 0.1 * jax.random.normal(ks[0], (128, Cin), jnp.float32),
        # nn.BatchNorm2d(128, eps=0.001) eval-mode parameters / running stats
        "bn_gamma": 1.0 + 0.1 * jax.random.normal(ks[1], (128,), jnp.float32),
        "bn_beta": 0.1 * jax.random.normal(ks[2], (128,), jnp.float32),
        "bn_mean": 0.1 * jax.random.normal(ks[3], (128,), jnp.float32),
        "bn_var": jax.random.uniform(ks[4], (128,), jnp.float32, 0.5, 1.5),
        # nn.Linear(2048, 1024)
        "fc1_w": 0.02 * jax.random.normal(ks[5], (1024, 2048), jnp.float32),
        "fc1_b": 0.02 * jax.random.normal(ks[6], (1024,), jnp.float32),
        # nn.Linear(1024, output_dim)
        "fc2_w": 0.02 * jax.random.normal(ks[7], (D, 1024), jnp.float32),
        "fc2_b": 0.02 * jax.random.normal(ks[8], (D,), jnp.float32),
    }
    x = jax.random.normal(ks[9], (N, Cin, H, W), jnp.float32)

    out = jax.block_until_ready(inception_aux_forward(x, params))
    ref = jax.block_until_ready(reference(x, params))

    assert out.shape == (N, D), out.shape
    assert np.allclose(np.asarray(out), np.asarray(ref), atol=2e-2, rtol=2e-2), (
        "mismatch vs reference"
    )
    print("KERNEL_OK")
</pallas_src>

<mosaic_0001>
module attributes {stable_mosaic.version = 11 : i64} {
  func.func @_pool_conv_kernel(%arg0: i32, %arg1: memref<2x4x256xf32, #tpu.memory_space<vmem>>, %arg2: memref<256x16xf32, #tpu.memory_space<vmem>>, %arg3: memref<128x4xf32, #tpu.memory_space<vmem>>, %arg4: memref<1x128xf32, #tpu.memory_space<vmem>>, %arg5: memref<2x2048xbf16, #tpu.memory_space<vmem>>) attributes {dimension_semantics = [#tpu.dimension_semantics<parallel>], iteration_bounds = array<i64: 1>, scalar_prefetch = 0 : i64, scratch_operands = 0 : i64, tpu.core_type = #tpu.core_type<tc>, window_params = [{transform_indices = @transform_0, window_bounds = array<i64: 2, 4, 256>}, {pipeline_mode = #tpu.pipeline_mode<synchronous>, transform_indices = @transform_1, window_bounds = array<i64: 256, 16>}, {pipeline_mode = #tpu.pipeline_mode<synchronous>, transform_indices = @transform_2, window_bounds = array<i64: 128, 4>}, {pipeline_mode = #tpu.pipeline_mode<synchronous>, transform_indices = @transform_3, window_bounds = array<i64: 1, 128>}, {transform_indices = @transform_4, window_bounds = array<i64: 2, 2048>}]} {
    %c0 = arith.constant 0 : index
    %c0_0 = arith.constant 0 : index
    %c0_1 = arith.constant 0 : index
    %0 = vector.load %arg1[%c0, %c0_0, %c0_1] : memref<2x4x256xf32, #tpu.memory_space<vmem>>, vector<2x4x256xf32>
    %c0_2 = arith.constant 0 : index
    %c0_3 = arith.constant 0 : index
    %1 = vector.load %arg2[%c0_2, %c0_3] : memref<256x16xf32, #tpu.memory_space<vmem>>, vector<256x16xf32>
    "tpu.trace_start"() <{level = 10 : i32, message = "bcx,xs->bcs"}> : () -> ()
    %cst = arith.constant dense<0.000000e+00> : vector<2x4x16xf32>
    %2 = tpu.matmul %0, %1, %cst {dimension_numbers = #tpu.dot_dimension_numbers<[2], [0], [0, 1], [1], [0, 0, 0, 1, 1, 1], [], []>} : vector<2x4x256xf32>, vector<256x16xf32>, vector<2x4x16xf32> -> vector<2x4x16xf32>
    "tpu.trace_stop"() : () -> ()
    %c0_4 = arith.constant 0 : index
    %c0_5 = arith.constant 0 : index
    %3 = vector.load %arg3[%c0_4, %c0_5] : memref<128x4xf32, #tpu.memory_space<vmem>>, vector<128x4xf32>
    "tpu.trace_start"() <{level = 10 : i32, message = "bcs,oc->bso"}> : () -> ()
    %cst_6 = arith.constant dense<0.000000e+00> : vector<2x16x128xf32>
    %4 = tpu.matmul %2, %3, %cst_6 {dimension_numbers = #tpu.dot_dimension_numbers<[1], [1], [0, 2], [0], [0, 0, 0, 2, 1, 0], [], []>} : vector<2x4x16xf32>, vector<128x4xf32>, vector<2x16x128xf32> -> vector<2x16x128xf32>
    "tpu.trace_stop"() : () -> ()
    %c0_7 = arith.constant 0 : index
    %c0_8 = arith.constant 0 : index
    %5 = vector.load %arg4[%c0_7, %c0_8] : memref<1x128xf32, #tpu.memory_space<vmem>>, vector<1x128xf32>
    %6 = vector.shape_cast %5 : vector<1x128xf32> to vector<1x1x128xf32>
    %7 = vector.broadcast %6 : vector<1x1x128xf32> to vector<2x16x128xf32>
    %8 = arith.addf %4, %7 : vector<2x16x128xf32>
    %cst_9 = arith.constant 0.000000e+00 : f32
    %9 = vector.broadcast %cst_9 : f32 to vector<2x16x128xf32>
    %10 = arith.maximumf %8, %9 : vector<2x16x128xf32>
    %11 = arith.truncf %10 : vector<2x16x128xf32> to vector<2x16x128xbf16>
    %12 = vector.shape_cast %11 : vector<2x16x128xbf16> to vector<2x2048xbf16>
    %c0_10 = arith.constant 0 : index
    %c0_11 = arith.constant 0 : index
    %13 = vector.load %arg5[%c0_10, %c0_11] : memref<2x2048xbf16, #tpu.memory_space<vmem>>, vector<2x2048xbf16>
    tpu.vector_store %arg5[%c0_10, %c0_11], %12 {strides = array<i32>} : memref<2x2048xbf16, #tpu.memory_space<vmem>>, vector<2x2048xbf16>,
    return
  }
  func.func @transform_0(%arg0: i32) -> (i32, i32, i32) {
    %c0_i32 = arith.constant 0 : i32
    %c0_i32_0 = arith.constant 0 : i32
    %c0_i32_1 = arith.constant 0 : i32
    return %arg0, %c0_i32, %c0_i32_0 : i32, i32, i32
  }
  func.func @transform_1(%arg0: i32) -> (i32, i32) {
    %c0_i32 = arith.constant 0 : i32
    %c0_i32_0 = arith.constant 0 : i32
    %c0_i32_1 = arith.constant 0 : i32
    return %c0_i32, %c0_i32_0 : i32, i32
  }
  func.func @transform_2(%arg0: i32) -> (i32, i32) {
    %c0_i32 = arith.constant 0 : i32
    %c0_i32_0 = arith.constant 0 : i32
    %c0_i32_1 = arith.constant 0 : i32
    return %c0_i32, %c0_i32_0 : i32, i32
  }
  func.func @transform_3(%arg0: i32) -> (i32, i32) {
    %c0_i32 = arith.constant 0 : i32
    %c0_i32_0 = arith.constant 0 : i32
    %c0_i32_1 = arith.constant 0 : i32
    return %c0_i32, %c0_i32_0 : i32, i32
  }
  func.func @transform_4(%arg0: i32) -> (i32, i32) {
    %c0_i32 = arith.constant 0 : i32
    %c0_i32_0 = arith.constant 0 : i32
    return %arg0, %c0_i32 : i32, i32
  }
}

</mosaic_0001>

<llo_original>
// kernel: tpu_custom_call.1
$region0: #{tpu_custom_call.1}
  #allocation0 [shape = 'u32[]', space=smem, size = 0x4, offset = 0x4, fixed_abs, tag = 'smem constant byte address 0x4 - core index']
  #allocation1 [shape = 'u32[144,128]{1,0:T(1,128)}', space=vmem, size = 0x12000, scoped, tag = 'internal scratch']
  %s0 = inlined_call_operand.vmem [shape: f32[2,4,256], index: 0, kind: input, shape index: {}]
  %s1 = inlined_call_operand.vmem [shape: f32[256,16], index: 1, kind: input, shape index: {}]
  %s2 = inlined_call_operand.vmem [shape: f32[128,4], index: 2, kind: input, shape index: {}]
  %s3 = inlined_call_operand.vmem [shape: f32[1,128], index: 3, kind: input, shape index: {}]
  %s4 = inlined_call_operand.hbm [shape: bf16[2,2048], index: 4, kind: output, shape index: {}]
  %s5 = sld [smem:[#allocation0]]
  $region26: #{tpu_custom_call.1} parent=0
    _
  %s7 = ssub.s32 1, %s5
  %s8 = scalar_select 0, %s7, %s5
  $region1: #{tpu_custom_call.1} parent=0
    #allocation2 [shape = 'u8[8192]{0}', space=vmem, size = 0x2000, scoped, tag = 'output window, operand 0, single buffered']
    #allocation3 [shape = 's32[1]{0}', space=sflag, size = 0x4, scoped, tag = 'scoped memory for tpu_custom_call.1']
    %9 = vsyncpa [#allocation3], 0
    // Predicated region
    $region2: #{tpu_custom_call.1} parent=1 // pred_check
      _
    $region3: #{tpu_custom_call.1} parent=1 // pred_check_branch
      %11 = sbr.rel (0) target = $region5
    $region4: #{tpu_custom_call.1} parent=1 // pred_region
      _
    $region5: #{tpu_custom_call.1} parent=1 // pred_fallthru
      _
    // Predicated region
    $region6: #{tpu_custom_call.1} parent=1 // pred_check
      _
    $region7: #{tpu_custom_call.1} parent=1 // pred_check_branch
      %13 = sbr.rel (0) target = $region9
    $region8: #{tpu_custom_call.1} parent=1 // pred_region
      _
    $region9: #{tpu_custom_call.1} parent=1 // pred_fallthru
      _
    // Predicated region
    $region10: #{tpu_custom_call.1} parent=1 // pred_check
      _
    $region11: #{tpu_custom_call.1} parent=1 // pred_check_branch
      %15 = sbr.rel (0) target = $region13
    $region12: #{tpu_custom_call.1} parent=1 // pred_region
      _
    $region13: #{tpu_custom_call.1} parent=1 // pred_fallthru
      _
    // Predicated region
    $region14: #{tpu_custom_call.1} parent=1 // pred_check
      _
    $region15: #{tpu_custom_call.1} parent=1 // pred_check_branch
      %17 = sbr.rel (0) target = $region17
    $region16: #{tpu_custom_call.1} parent=1 // pred_region
      _
    $region17: #{tpu_custom_call.1} parent=1 // pred_fallthru
      _
    %v19 = vld [vmem:[%s0] sm:$0xff]
    %v20 = vld [vmem:[%s0 + $0x8] sm:$0xff]
    %v21 = vld [vmem:[%s1] sm:$0xff]
    %v22 = vld [vmem:[%s1 + $0x8] sm:$0xff]
    %v23 = vld [vmem:[%s1 + $0x10] sm:$0xff]
    %v24 = vld [vmem:[%s1 + $0x18] sm:$0xff]
    %v25 = vld [vmem:[%s1 + $0x20] sm:$0xff]
    %v26 = vld [vmem:[%s1 + $0x28] sm:$0xff]
    %v27 = vld [vmem:[%s1 + $0x30] sm:$0xff]
    %v28 = vld [vmem:[%s1 + $0x38] sm:$0xff]
    %v29 = vld [vmem:[%s1 + $0x40] sm:$0xff]
    %v30 = vld [vmem:[%s1 + $0x48] sm:$0xff]
    %v31 = vld [vmem:[%s1 + $0x50] sm:$0xff]
    %v32 = vld [vmem:[%s1 + $0x58] sm:$0xff]
    %v33 = vld [vmem:[%s1 + $0x60] sm:$0xff]
    %v34 = vld [vmem:[%s1 + $0x68] sm:$0xff]
    %v35 = vld [vmem:[%s1 + $0x70] sm:$0xff]
    %v36 = vld [vmem:[%s1 + $0x78] sm:$0xff]
    %v37 = vld [vmem:[%s1 + $0x80] sm:$0xff]
    %v38 = vld [vmem:[%s1 + $0x88] sm:$0xff]
    %v39 = vld [vmem:[%s1 + $0x90] sm:$0xff]
    %v40 = vld [vmem:[%s1 + $0x98] sm:$0xff]
    %v41 = vld [vmem:[%s1 + $0xa0] sm:$0xff]
    %v42 = vld [vmem:[%s1 + $0xa8] sm:$0xff]
    %v43 = vld [vmem:[%s1 + $0xb0] sm:$0xff]
    %v44 = vld [vmem:[%s1 + $0xb8] sm:$0xff]
    %v45 = vld [vmem:[%s1 + $0xc0] sm:$0xff]
    %v46 = vld [vmem:[%s1 + $0xc8] sm:$0xff]
    %v47 = vld [vmem:[%s1 + $0xd0] sm:$0xff]
    %v48 = vld [vmem:[%s1 + $0xd8] sm:$0xff]
    %v49 = vld [vmem:[%s1 + $0xe0] sm:$0xff]
    %v50 = vld [vmem:[%s1 + $0xe8] sm:$0xff]
    %v51 = vld [vmem:[%s1 + $0xf0] sm:$0xff]
    %v52 = vld [vmem:[%s1 + $0xf8] sm:$0xff]
    %v55 = vcombine.low %v19, %v20
    %v56 = vcombine.high %v19, %v20
    %59 = vmatprep.subr.mxu0 0.0
    %60 = vmatpush1.msra.mxu0 %v21
    %61 = vmatprep.subr.mxu0 0.0
    %62 = vmatpush1.msra.mxu0 %v22
    %63 = vmatprep.subr.mxu0 0.0
    %64 = vmatpush1.msra.mxu0 %v23
    %65 = vmatprep.subr.mxu0 0.0
    %66 = vmatpush1.msra.mxu0 %v24
    %67 = vmatprep.subr.mxu0 0.0
    %68 = vmatpush1.msra.mxu0 %v25
    %69 = vmatprep.subr.mxu0 0.0
    %70 = vmatpush1.msra.mxu0 %v26
    %71 = vmatprep.subr.mxu0 0.0
    %72 = vmatpush1.msra.mxu0 %v27
    %73 = vmatprep.subr.mxu0 0.0
    %74 = vmatpush1.msra.mxu0 %v28
    %75 = vmatprep.subr.mxu0 0.0
    %76 = vmatpush1.msra.mxu0 %v29
    %77 = vmatprep.subr.mxu0 0.0
    %78 = vmatpush1.msra.mxu0 %v30
    %79 = vmatprep.subr.mxu0 0.0
    %80 = vmatpush1.msra.mxu0 %v31
    %81 = vmatprep.subr.mxu0 0.0
    %82 = vmatpush1.msra.mxu0 %v32
    %83 = vmatprep.subr.mxu0 0.0
    %84 = vmatpush1.msra.mxu0 %v33
    %85 = vmatprep.subr.mxu0 0.0
    %86 = vmatpush1.msra.mxu0 %v34
    %87 = vmatprep.subr.mxu0 0.0
    %88 = vmatpush1.msra.mxu0 %v35
    %89 = vmatprep.subr.mxu0 0.0
    %90 = vmatpush1.msra.mxu0 %v36
    %91 = vmatprep.subr.mxu0 0.0
    %92 = vmatpush1.msra.mxu0 %v37
    %93 = vmatprep.subr.mxu0 0.0
    %94 = vmatpush1.msra.mxu0 %v38
    %95 = vmatprep.subr.mxu0 0.0
    %96 = vmatpush1.msra.mxu0 %v39
    %97 = vmatprep.subr.mxu0 0.0
    %98 = vmatpush1.msra.mxu0 %v40
    %99 = vmatprep.subr.mxu0 0.0
    %100 = vmatpush1.msra.mxu0 %v41
    %101 = vmatprep.subr.mxu0 0.0
    %102 = vmatpush1.msra.mxu0 %v42
    %103 = vmatprep.subr.mxu0 0.0
    %104 = vmatpush1.msra.mxu0 %v43
    %105 = vmatprep.subr.mxu0 0.0
    %106 = vmatpush1.msra.mxu0 %v44
    %107 = vmatprep.subr.mxu0 0.0
    %108 = vmatpush1.msra.mxu0 %v45
    %109 = vmatprep.subr.mxu0 0.0
    %110 = vmatpush1.msra.mxu0 %v46
    %111 = vmatprep.subr.mxu0 0.0
    %112 = vmatpush1.msra.mxu0 %v47
    %113 = vmatprep.subr.mxu0 0.0
    %114 = vmatpush1.msra.mxu0 %v48
    %115 = vmatprep.subr.mxu0 0.0
    %116 = vmatpush1.msra.mxu0 %v49
    %117 = vmatprep.subr.mxu0 0.0
    %118 = vmatpush1.msra.mxu0 %v50
    %119 = vmatprep.subr.mxu0 0.0
    %120 = vmatpush1.msra.mxu0 %v51
    %121 = vmatprep.subr.mxu0 0.0
    %122 = vmatpush1.msra.mxu0 %v52
    %123 = vmatprep.mubr.f32.mxu0 %v56
    %124 = vmatmul.mubr.f32.gmra.mrb[0].mxu0 %v55
    %v125 = vpop.f32.mrb[0].mxu0
    %v126 = vadd.f32 0.0, %v125
    %v127 = vpop.f32.mrb[0].mxu0
    %128 = vdwg.mxu0
    %v130 = vcombine.high %v126, %v126
    %v132 = vld [vmem:[%s2] sm:$0xff]
    %v133 = vld [vmem:[%s2 + $0x8] sm:$0xff]
    %v134 = vld [vmem:[%s2 + $0x10] sm:$0xff]
    %v135 = vld [vmem:[%s2 + $0x18] sm:$0xff]
    %v136 = vld [vmem:[%s2 + $0x20] sm:$0xff]
    %v137 = vld [vmem:[%s2 + $0x28] sm:$0xff]
    %v138 = vld [vmem:[%s2 + $0x30] sm:$0xff]
    %v139 = vld [vmem:[%s2 + $0x38] sm:$0xff]
    %v140 = vld [vmem:[%s2 + $0x40] sm:$0xff]
    %v141 = vld [vmem:[%s2 + $0x48] sm:$0xff]
    %v142 = vld [vmem:[%s2 + $0x50] sm:$0xff]
    %v143 = vld [vmem:[%s2 + $0x58] sm:$0xff]
    %v144 = vld [vmem:[%s2 + $0x60] sm:$0xff]
    %v145 = vld [vmem:[%s2 + $0x68] sm:$0xff]
    %v146 = vld [vmem:[%s2 + $0x70] sm:$0xff]
    %v147 = vld [vmem:[%s2 + $0x78] sm:$0xff]
    %v148 = vld [vmem:[%s3] sm:$0x1]
    %v150 = vlaneseq
    %v151 = vshrl.u32 %v150, 7
    %v152 = vsub.s32 0, %v151
    %v153 = vrot.slane %v148, %v152
    %155 = vxpose.xlu0.b32.start [1/16] %v126, 128
    %156 = vxpose.xlu0.b32.cont [2/16] 0.0, 128
    %157 = vxpose.xlu0.b32.cont [3/16] 0.0, 128
    %158 = vxpose.xlu0.b32.cont [4/16] 0.0, 128
    %159 = vxpose.xlu0.b32.cont [5/16] 0.0, 128
    %160 = vxpose.xlu0.b32.cont [6/16] 0.0, 128
    %161 = vxpose.xlu0.b32.cont [7/16] 0.0, 128
    %162 = vxpose.xlu0.b32.cont [8/16] 0.0, 128
    %163 = vxpose.xlu0.b32.cont [9/16] 0.0, 128
    %164 = vxpose.xlu0.b32.cont [10/16] 0.0, 128
    %165 = vxpose.xlu0.b32.cont [11/16] 0.0, 128
    %166 = vxpose.xlu0.b32.cont [12/16] 0.0, 128
    %167 = vxpose.xlu0.b32.cont [13/16] 0.0, 128
    %168 = vxpose.xlu0.b32.cont [14/16] 0.0, 128
    %169 = vxpose.xlu0.b32.cont [15/16] 0.0, 128
    %170 = vxpose.xlu0.b32.end [16/16] 0.0, 128
    %v171 = vpop.trf.xlu0
    %v172 = vpop.trf.xlu0
    %v173 = vpop.trf.xlu0
    %v174 = vpop.trf.xlu0
    %v175 = vpop.trf.xlu0
    %v176 = vpop.trf.xlu0
    %v177 = vpop.trf.xlu0
    %v178 = vpop.trf.xlu0
    %v179 = vpop.trf.xlu0
    %v180 = vpop.trf.xlu0
    %v181 = vpop.trf.xlu0
    %v182 = vpop.trf.xlu0
    %v183 = vpop.trf.xlu0
    %v184 = vpop.trf.xlu0
    %v185 = vpop.trf.xlu0
    %v186 = vpop.trf.xlu0
    %187 = vxpose.xlu0.b32.start [1/16] %v130, 128
    %188 = vxpose.xlu0.b32.cont [2/16] 0.0, 128
    %189 = vxpose.xlu0.b32.cont [3/16] 0.0, 128
    %190 = vxpose.xlu0.b32.cont [4/16] 0.0, 128
    %191 = vxpose.xlu0.b32.cont [5/16] 0.0, 128
    %192 = vxpose.xlu0.b32.cont [6/16] 0.0, 128
    %193 = vxpose.xlu0.b32.cont [7/16] 0.0, 128
    %194 = vxpose.xlu0.b32.cont [8/16] 0.0, 128
    %195 = vxpose.xlu0.b32.cont [9/16] 0.0, 128
    %196 = vxpose.xlu0.b32.cont [10/16] 0.0, 128
    %197 = vxpose.xlu0.b32.cont [11/16] 0.0, 128
    %198 = vxpose.xlu0.b32.cont [12/16] 0.0, 128
    %199 = vxpose.xlu0.b32.cont [13/16] 0.0, 128
    %200 = vxpose.xlu0.b32.cont [14/16] 0.0, 128
    %201 = vxpose.xlu0.b32.cont [15/16] 0.0, 128
    %202 = vxpose.xlu0.b32.end [16/16] 0.0, 128
    %v203 = vpop.trf.xlu0
    %v204 = vpop.trf.xlu0
    %v205 = vpop.trf.xlu0
    %v206 = vpop.trf.xlu0
    %v207 = vpop.trf.xlu0
    %v208 = vpop.trf.xlu0
    %v209 = vpop.trf.xlu0
    %v210 = vpop.trf.xlu0
    %v211 = vpop.trf.xlu0
    %v212 = vpop.trf.xlu0
    %v213 = vpop.trf.xlu0
    %v214 = vpop.trf.xlu0
    %v215 = vpop.trf.xlu0
    %v216 = vpop.trf.xlu0
    %v217 = vpop.trf.xlu0
    %v218 = vpop.trf.xlu0
    %vm219 = vcmask 31744
    %v221 = vsel %vm219, %v171, 0
    %v224 = vsel %vm219, %v172, 0
    %v227 = vsel %vm219, %v203, 0
    %v230 = vsel %vm219, %v204, 0
    %v233 = vsel %vm219, %v132, 0
    %v236 = vsel %vm219, %v133, 0
    %v239 = vsel %vm219, %v134, 0
    %v242 = vsel %vm219, %v135, 0
    %v245 = vsel %vm219, %v136, 0
    %v248 = vsel %vm219, %v137, 0
    %v251 = vsel %vm219, %v138, 0
    %v254 = vsel %vm219, %v139, 0
    %v257 = vsel %vm219, %v140, 0
    %v260 = vsel %vm219, %v141, 0
    %v263 = vsel %vm219, %v142, 0
    %v266 = vsel %vm219, %v143, 0
    %v269 = vsel %vm219, %v144, 0
    %v272 = vsel %vm219, %v145, 0
    %v275 = vsel %vm219, %v146, 0
    %v278 = vsel %vm219, %v147, 0
    %280 = vmatprep.subr.mxu0 0.0
    %281 = vmatpush1.xpose.msra.mxu0 %v233
    %282 = vmatprep.subr.mxu0 0.0
    %283 = vmatpush1.xpose.msra.mxu0 %v236
    %284 = vmatprep.subr.mxu0 0.0
    %285 = vmatpush1.xpose.msra.mxu0 %v239
    %286 = vmatprep.subr.mxu0 0.0
    %287 = vmatpush1.xpose.msra.mxu0 %v242
    %288 = vmatprep.subr.mxu0 0.0
    %289 = vmatpush1.xpose.msra.mxu0 %v245
    %290 = vmatprep.subr.mxu0 0.0
    %291 = vmatpush1.xpose.msra.mxu0 %v248
    %292 = vmatprep.subr.mxu0 0.0
    %293 = vmatpush1.xpose.msra.mxu0 %v251
    %294 = vmatprep.subr.mxu0 0.0
    %295 = vmatpush1.xpose.msra.mxu0 %v254
    %296 = vmatprep.subr.mxu0 0.0
    %297 = vmatpush1.xpose.msra.mxu0 %v257
    %298 = vmatprep.subr.mxu0 0.0
    %299 = vmatpush1.xpose.msra.mxu0 %v260
    %300 = vmatprep.subr.mxu0 0.0
    %301 = vmatpush1.xpose.msra.mxu0 %v263
    %302 = vmatprep.subr.mxu0 0.0
    %303 = vmatpush1.xpose.msra.mxu0 %v266
    %304 = vmatprep.subr.mxu0 0.0
    %305 = vmatpush1.xpose.msra.mxu0 %v269
    %306 = vmatprep.subr.mxu0 0.0
    %307 = vmatpush1.xpose.msra.mxu0 %v272
    %308 = vmatprep.subr.mxu0 0.0
    %309 = vmatpush1.xpose.msra.mxu0 %v275
    %310 = vmatprep.subr.mxu0 0.0
    %311 = vmatpush1.xpose.msra.mxu0 %v278
    %312 = vmatprep.subr.mxu0 0.0
    %313 = vmatpush1.xpose.msra.mxu0 0.0
    %314 = vmatprep.subr.mxu0 0.0
    %315 = vmatpush1.xpose.msra.mxu0 0.0
    %316 = vmatprep.subr.mxu0 0.0
    %317 = vmatpush1.xpose.msra.mxu0 0.0
    %318 = vmatprep.subr.mxu0 0.0
    %319 = vmatpush1.xpose.msra.mxu0 0.0
    %320 = vmatprep.subr.mxu0 0.0
    %321 = vmatpush1.xpose.msra.mxu0 0.0
    %322 = vmatprep.subr.mxu0 0.0
    %323 = vmatpush1.xpose.msra.mxu0 0.0
    %324 = vmatprep.subr.mxu0 0.0
    %325 = vmatpush1.xpose.msra.mxu0 0.0
    %326 = vmatprep.subr.mxu0 0.0
    %327 = vmatpush1.xpose.msra.mxu0 0.0
    %328 = vmatprep.subr.mxu0 0.0
    %329 = vmatpush1.xpose.msra.mxu0 0.0
    %330 = vmatprep.subr.mxu0 0.0
    %331 = vmatpush1.xpose.msra.mxu0 0.0
    %332 = vmatprep.subr.mxu0 0.0
    %333 = vmatpush1.xpose.msra.mxu0 0.0
    %334 = vmatprep.subr.mxu0 0.0
    %335 = vmatpush1.xpose.msra.mxu0 0.0
    %336 = vmatprep.subr.mxu0 0.0
    %337 = vmatpush1.xpose.msra.mxu0 0.0
    %338 = vmatprep.subr.mxu0 0.0
    %339 = vmatpush1.xpose.msra.mxu0 0.0
    %340 = vmatprep.subr.mxu0 0.0
    %341 = vmatpush1.xpose.msra.mxu0 0.0
    %342 = vmatprep.subr.mxu0 0.0
    %343 = vmatpush1.xpose.msra.mxu0 0.0
    %344 = vmatprep.mubr.f32.mxu0 0.0
    %345 = vmatmul.mubr.f32.gmra.mrb[0].mxu0 %v221
    %v346 = vpop.f32.mrb[0].mxu0
    %v347 = vadd.f32 %v153, %v346
    %v348 = vpop.f32.mrb[0].mxu0
    %349 = vmatprep.mubr.f32.mxu0 0.0
    %350 = vmatmul.mubr.f32.gmra.mrb[0].mxu0 %v224
    %v351 = vpop.f32.mrb[0].mxu0
    %v352 = vadd.f32 %v153, %v351
    %v353 = vpop.f32.mrb[0].mxu0
    %354 = vmatprep.mubr.f32.mxu0 0.0
    %355 = vmatmul.mubr.f32.gmra.mrb[0].mxu0 %v227
    %v356 = vpop.f32.mrb[0].mxu0
    %v357 = vadd.f32 %v153, %v356
    %v358 = vpop.f32.mrb[0].mxu0
    %359 = vmatprep.mubr.f32.mxu0 0.0
    %360 = vmatmul.mubr.f32.gmra.mrb[0].mxu0 %v230
    %v361 = vpop.f32.mrb[0].mxu0
    %v362 = vadd.f32 %v153, %v361
    %v363 = vpop.f32.mrb[0].mxu0
    %364 = vdwg.mxu0
    %v365 = vmax.f32 %v347, 0.0
    %v366 = vmax.f32 %v352, 0.0
    %v367 = vmax.f32 %v357, 0.0
    %v368 = vmax.f32 %v362, 0.0
    %v369 = vpack.c.bf16 %v366, %v365
    %v370 = vpack.c.bf16 %v368, %v367
    %v373 = vpack.i.b16 %v370, %v369
    %v375 = vshrl.u32 %v369, 16
    %v376 = vshrl.u32 %v370, 16
    %v377 = vpack.i.b16 %v376, %v375
    %v380 = vpack.i.b16 0, 0
    %v382 = vshrl.u32 0, 16
    %v383 = vpack.i.b16 %v382, %v382
    %v385 = vcombine.high %v373, %v380
    %v387 = vunpack.c.l.s4 1983009808
    %v388 = vunpack.c.0.s8 %v387
    %v389 = vlaneseq
    %v390 = vshrl.u32 %v389, 7
    %v391 = vsub.s32 %v388, %v390
    %v392 = vrot.slane %v373, %v391
    %v394 = vunpack.c.l.s4 1983009808
    %v395 = vunpack.c.0.s8 %v394
    %v396 = vlaneseq
    %v397 = vshrl.u32 %v396, 7
    %v398 = vsub.s32 %v395, %v397
    %v399 = vrot.slane %v385, %v398
    %v400 = vcombine.high %v392, 0
    %v402 = vunpack.c.l.s4 1934713408
    %v403 = vunpack.c.0.s8 %v402
    %v404 = vlaneseq
    %v405 = vshrl.u32 %v404, 7
    %v406 = vsub.s32 %v403, %v405
    %v407 = vrot.slane %v392, %v406
    %v409 = vunpack.c.l.s4 1934713408
    %v410 = vunpack.c.0.s8 %v409
    %v411 = vlaneseq
    %v412 = vshrl.u32 %v411, 7
    %v413 = vsub.s32 %v410, %v412
    %v414 = vrot.slane %v400, %v413
    %v415 = vcombine.high %v399, 0
    %v417 = vunpack.c.l.s4 1934713408
    %v418 = vunpack.c.0.s8 %v417
    %v419 = vlaneseq
    %v420 = vshrl.u32 %v419, 7
    %v421 = vsub.s32 %v418, %v420
    %v422 = vrot.slane %v399, %v421
    %v424 = vunpack.c.l.s4 1934713408
    %v425 = vunpack.c.0.s8 %v424
    %v426 = vlaneseq
    %v427 = vshrl.u32 %v426, 7
    %v428 = vsub.s32 %v425, %v427
    %v429 = vrot.slane %v415, %v428
    %v430 = vcombine.high %v407, 0
    %v431 = vcombine.high %v414, 0
    %v432 = vcombine.high %v422, 0
    %v433 = vcombine.high %v429, 0
    %v434 = vcombine.high %v377, %v383
    %v436 = vunpack.c.l.s4 1983009808
    %v437 = vunpack.c.0.s8 %v436
    %v438 = vlaneseq
    %v439 = vshrl.u32 %v438, 7
    %v440 = vsub.s32 %v437, %v439
    %v441 = vrot.slane %v377, %v440
    %v443 = vunpack.c.l.s4 1983009808
    %v444 = vunpack.c.0.s8 %v443
    %v445 = vlaneseq
    %v446 = vshrl.u32 %v445, 7
    %v447 = vsub.s32 %v444, %v446
    %v448 = vrot.slane %v434, %v447
    %v449 = vcombine.high %v441, 0
    %v451 = vunpack.c.l.s4 1934713408
    %v452 = vunpack.c.0.s8 %v451
    %v453 = vlaneseq
    %v454 = vshrl.u32 %v453, 7
    %v455 = vsub.s32 %v452, %v454
    %v456 = vrot.slane %v441, %v455
    %v458 = vunpack.c.l.s4 1934713408
    %v459 = vunpack.c.0.s8 %v458
    %v460 = vlaneseq
    %v461 = vshrl.u32 %v460, 7
    %v462 = vsub.s32 %v459, %v461
    %v463 = vrot.slane %v449, %v462
    %v464 = vcombine.high %v448, 0
    %v466 = vunpack.c.l.s4 1934713408
    %v467 = vunpack.c.0.s8 %v466
    %v468 = vlaneseq
    %v469 = vshrl.u32 %v468, 7
    %v470 = vsub.s32 %v467, %v469
    %v471 = vrot.slane %v448, %v470
    %v473 = vunpack.c.l.s4 1934713408
    %v474 = vunpack.c.0.s8 %v473
    %v475 = vlaneseq
    %v476 = vshrl.u32 %v475, 7
    %v477 = vsub.s32 %v474, %v476
    %v478 = vrot.slane %v464, %v477
    %v479 = vcombine.high %v456, 0
    %v480 = vcombine.high %v463, 0
    %v481 = vcombine.high %v471, 0
    %v482 = vcombine.high %v478, 0
    %v499 = vcombine.low %v407, %v456
    %v500 = vcombine.low %v430, %v479
    %v501 = vcombine.low %v414, %v463
    %v502 = vcombine.low %v431, %v480
    %v504 = vunpack.c.l.s4 1966171168
    %v505 = vunpack.c.0.s8 %v504
    %v506 = vlaneseq
    %v507 = vshrl.u32 %v506, 7
    %v508 = vsub.s32 %v505, %v507
    %v509 = vrot.slane %v499, %v508
    %v511 = vunpack.c.l.s4 1966171168
    %v512 = vunpack.c.0.s8 %v511
    %v513 = vlaneseq
    %v514 = vshrl.u32 %v513, 7
    %v515 = vsub.s32 %v512, %v514
    %v516 = vrot.slane %v500, %v515
    %v518 = vunpack.c.l.s4 1966171168
    %v519 = vunpack.c.0.s8 %v518
    %v520 = vlaneseq
    %v521 = vshrl.u32 %v520, 7
    %v522 = vsub.s32 %v519, %v521
    %v523 = vrot.slane %v501, %v522
    %v525 = vunpack.c.l.s4 1966171168
    %v526 = vunpack.c.0.s8 %v525
    %v527 = vlaneseq
    %v528 = vshrl.u32 %v527, 7
    %v529 = vsub.s32 %v526, %v528
    %v530 = vrot.slane %v502, %v529
    %v531 = vcombine.low %v509, %v516
    %v532 = vcombine.low %v523, %v530
    %v534 = vunpack.c.l.s4 1966171168
    %v535 = vunpack.c.0.s8 %v534
    %v536 = vlaneseq
    %v537 = vshrl.u32 %v536, 7
    %v538 = vsub.s32 %v535, %v537
    %v539 = vrot.slane %v531, %v538
    %v541 = vunpack.c.l.s4 1966171168
    %v542 = vunpack.c.0.s8 %v541
    %v543 = vlaneseq
    %v544 = vshrl.u32 %v543, 7
    %v545 = vsub.s32 %v542, %v544
    %v546 = vrot.slane %v532, %v545
    %v547 = vcombine.low %v539, %v546
    %v548 = vcombine.low %v422, %v471
    %v549 = vcombine.low %v432, %v481
    %v550 = vcombine.low %v429, %v478
    %v551 = vcombine.low %v433, %v482
    %v553 = vunpack.c.l.s4 1966171168
    %v554 = vunpack.c.0.s8 %v553
    %v555 = vlaneseq
    %v556 = vshrl.u32 %v555, 7
    %v557 = vsub.s32 %v554, %v556
    %v558 = vrot.slane %v548, %v557
    %v560 = vunpack.c.l.s4 1966171168
    %v561 = vunpack.c.0.s8 %v560
    %v562 = vlaneseq
    %v563 = vshrl.u32 %v562, 7
    %v564 = vsub.s32 %v561, %v563
    %v565 = vrot.slane %v549, %v564
    %v567 = vunpack.c.l.s4 1966171168
    %v568 = vunpack.c.0.s8 %v567
    %v569 = vlaneseq
    %v570 = vshrl.u32 %v569, 7
    %v571 = vsub.s32 %v568, %v570
    %v572 = vrot.slane %v550, %v571
    %v574 = vunpack.c.l.s4 1966171168
    %v575 = vunpack.c.0.s8 %v574
    %v576 = vlaneseq
    %v577 = vshrl.u32 %v576, 7
    %v578 = vsub.s32 %v575, %v577
    %v579 = vrot.slane %v551, %v578
    %v580 = vcombine.low %v558, %v565
    %v581 = vcombine.low %v572, %v579
    %v583 = vunpack.c.l.s4 1966171168
    %v584 = vunpack.c.0.s8 %v583
    %v585 = vlaneseq
    %v586 = vshrl.u32 %v585, 7
    %v587 = vsub.s32 %v584, %v586
    %v588 = vrot.slane %v580, %v587
    %v590 = vunpack.c.l.s4 1966171168
    %v591 = vunpack.c.0.s8 %v590
    %v592 = vlaneseq
    %v593 = vshrl.u32 %v592, 7
    %v594 = vsub.s32 %v591, %v593
    %v595 = vrot.slane %v581, %v594
    %v596 = vcombine.low %v588, %v595
    %599 = vst [vmem:[#allocation2] sm:$0xff] %v547
    %600 = vst [vmem:[#allocation2 + $0x8] sm:$0xff] %v596
    // Predicated region
    $region18: #{tpu_custom_call.1} parent=1 // pred_check
      _
    $region19: #{tpu_custom_call.1} parent=1 // pred_check_branch
      %602 = sbr.rel (0) target = $region21
    $region20: #{tpu_custom_call.1} parent=1 // pred_region
      %s604 = ssub.s32 256, 256
      %605 = vsyncadd [#allocation3], %s604
      %s607 = sshll.u32 [#allocation2], 4
      %s608 = int_to_ptr.vmem [resolvable:$true] %s607
      %610 = dma.vmem_to_hbm [thread:$0]  %s608, 256, %s4, [#allocation3]
    $region21: #{tpu_custom_call.1} parent=1 // pred_fallthru
      _
    // Predicated region
    $region22: #{tpu_custom_call.1} parent=1 // pred_check
      _
    $region23: #{tpu_custom_call.1} parent=1 // pred_check_branch
      %612 = sbr.rel (0) target = $region25
    $region24: #{tpu_custom_call.1} parent=1 // pred_region
      %613 = dma.done [#allocation3], 256
    $region25: #{tpu_custom_call.1} parent=1 // pred_fallthru
      _
    %614 = vsyncpa [#allocation3], 1

</llo_original>
